<compile_context>
chip_gen: v7x
topology: tpu7x:2x2x1
jax: 0.10.0
libtpu: 0.0.40
codegen_flags: <defaults>
</compile_context>

<pallas_src>
import jax
import jax.numpy as jnp
from jax.experimental import pallas as pl
from jax.experimental.pallas import tpu as pltpu


_MAX_TILE_LANES = 16384  # f32 logits block: 8 sublanes * 16K lanes = 512 KiB/buffer


def _pick_tile(hw):
    """Largest lane tile that is a multiple of 128, divides hw, fits the cap."""
    if hw % 128 != 0:
        return hw  # full-extent last-dim block (always legal)
    t = hw
    while t > _MAX_TILE_LANES and t % 2 == 0 and (t // 2) % 128 == 0:
        t //= 2
    return t


# --------------------------------------------------------------------------
# Pallas kernels
# --------------------------------------------------------------------------
def _log_prob_kernel(logits_ref, samples_ref, out_ref):
    # logits_ref : (1, K, TN) native dtype -- the K bucket rows of one channel
    # samples_ref: (1, 1, TN) f32
    # out_ref    : (1, 1, 1)  f32, resident across the (c, t) reduction axes
    c = pl.program_id(1)
    t = pl.program_id(2)

    @pl.when(jnp.logical_and(c == 0, t == 0))
    def _init():
        out_ref[...] = jnp.zeros_like(out_ref)

    logits = logits_ref[0].astype(jnp.float32)          # (K, TN)
    s = samples_ref[0]                                   # (1, TN)
    K, TN = logits.shape

    # quantize: clamp(floor(samples * K), 0, K-1) -> int bucket index
    q = jnp.clip(jnp.floor(s * float(K)), 0.0, float(K - 1)).astype(jnp.int32)

    # stable log-softmax pieces; `shifted` reused for both exp and the gather
    m = jnp.max(logits, axis=0, keepdims=True)           # (1, TN)
    shifted = logits - m                                  # (K, TN)
    log_z = jnp.log(jnp.sum(jnp.exp(shifted), axis=0, keepdims=True))

    # gather the selected-bucket (relative) logit via where + max (XLU)
    k_iota = jax.lax.broadcasted_iota(jnp.int32, (K, TN), 0)
    sel = jnp.where(k_iota == q, shifted, -jnp.inf)
    chosen = jnp.max(sel, axis=0, keepdims=True)          # (1, TN)

    # Independent(..., 3): accumulate the per-element log-probs
    out_ref[...] += jnp.sum(chosen - log_z, axis=1, keepdims=True).reshape(1, 1, 1)


def _sample_kernel(logits_ref, u_ref, out_ref):
    # logits_ref: (1, K, TN) native dtype ; u_ref: (1, 1, TN) f32
    # out_ref   : (1, 1, TN) f32
    logits = logits_ref[0].astype(jnp.float32)            # (K, TN)
    u = u_ref[0]                                           # (1, TN)
    K = logits.shape[0]

    # inverse-CDF categorical sampling: one uniform per element, K exps.
    m = jnp.max(logits, axis=0, keepdims=True)             # (1, TN)
    p = jnp.exp(logits - m)                                 # (K, TN)
    z = jnp.sum(p, axis=0, keepdims=True)                   # (1, TN)
    thresh = u * z

    cdf = jnp.zeros_like(thresh)
    idx = jnp.zeros_like(thresh)
    for k in range(K):                                      # K is small: unrolled
        cdf = cdf + p[k:k + 1, :]
        idx = idx + (thresh >= cdf).astype(jnp.float32)
    idx = jnp.minimum(idx, float(K - 1))

    # de-quantize: bucket index -> bucket center in (0, 1)
    out_ref[...] = (idx * (1.0 / float(K)) + 0.5 / float(K))[None]


# --------------------------------------------------------------------------
# Pallas wrappers
# --------------------------------------------------------------------------
def _log_prob_pallas(params_bkn, samples_b1n, C, K, HW):
    B = params_bkn.shape[0]
    tn = _pick_tile(HW)
    T = HW // tn
    itemsize = jnp.dtype(params_bkn.dtype).itemsize
    n_elem = B * C * HW
    cost = pl.CostEstimate(
        flops=n_elem * (3 * K + 8),
        transcendentals=n_elem * (K + 1),
        bytes_accessed=B * C * K * HW * itemsize + n_elem * 4 + B * 4,
    )
    out = pl.pallas_call(
        _log_prob_kernel,
        out_shape=jax.ShapeDtypeStruct((B, 1, 1), jnp.float32),
        grid=(B, C, T),
        in_specs=[
            pl.BlockSpec((1, K, tn), lambda b, c, t: (b, c, t)),
            pl.BlockSpec((1, 1, tn), lambda b, c, t: (b, 0, c * T + t)),
        ],
        out_specs=pl.BlockSpec((1, 1, 1), lambda b, c, t: (b, 0, 0)),
        compiler_params=pltpu.CompilerParams(
            dimension_semantics=("parallel", "arbitrary", "arbitrary"),
            vmem_limit_bytes=32 * 1024 * 1024),
        cost_estimate=cost,
    )(params_bkn, samples_b1n)
    return out[:, 0, 0]                                    # (B,)


def _sample_pallas(params_bkn, u_b1n, C, K, HW):
    B = params_bkn.shape[0]
    tn = _pick_tile(HW)
    T = HW // tn
    itemsize = jnp.dtype(params_bkn.dtype).itemsize
    n_elem = B * C * HW
    cost = pl.CostEstimate(
        flops=n_elem * (4 * K + 6),
        transcendentals=n_elem * K,
        bytes_accessed=B * C * K * HW * itemsize + 2 * n_elem * 4,
    )
    return pl.pallas_call(
        _sample_kernel,
        out_shape=jax.ShapeDtypeStruct((B, 1, C * HW), jnp.float32),
        grid=(B, C, T),
        in_specs=[
            pl.BlockSpec((1, K, tn), lambda b, c, t: (b, c, t)),
            pl.BlockSpec((1, 1, tn), lambda b, c, t: (b, 0, c * T + t)),
        ],
        out_specs=pl.BlockSpec((1, 1, tn), lambda b, c, t: (b, 0, c * T + t)),
        compiler_params=pltpu.CompilerParams(
            dimension_semantics=("parallel", "parallel", "parallel"),
            vmem_limit_bytes=32 * 1024 * 1024),
        cost_estimate=cost,
    )(params_bkn, u_b1n)                                   # (B, 1, C*HW)


# --------------------------------------------------------------------------
# Module-equivalent Python classes (glue in plain JAX)
# --------------------------------------------------------------------------
class IndependentQuantizedDistribution:
    """Independent(Categorical(logits), reinterpreted_batch_ndims=3).

    Consumes the NCHW params (B, C*K, H, W) directly: the kernels view them as
    (B, C*K, H*W) (metadata-only reshape) with the K buckets of channel c at
    rows [c*K, (c+1)*K) -- no XLA transpose on the hot path.
    """

    def __init__(self, distribution_params, num_buckets):
        B, CK, H, W = distribution_params.shape
        assert CK % num_buckets == 0
        self.num_buckets = num_buckets
        self._B, self._C, self._H, self._W = B, CK // num_buckets, H, W
        self._HW = H * W

        params = distribution_params
        # Keep the params' native dtype for the DMA; fall back to f32 when the
        # bucket dim would not line up with the sublane tiling of that dtype.
        sublane = 8 * max(1, 4 // jnp.dtype(params.dtype).itemsize)
        if num_buckets % sublane != 0 and num_buckets != CK:
            # TODO(synk): pad K up to the sublane tile instead of upcasting.
            params = params.astype(jnp.float32)
        self._params_bkn = params.reshape(B, CK, H * W)    # metadata-only

    @property
    def logits(self):
        # (B, C, H, W, K) view (same axis order as the PyTorch code); only
        # materialized if a caller actually asks for it.
        B, C, H, W, K = self._B, self._C, self._H, self._W, self.num_buckets
        r = self._params_bkn.reshape(B, C, K, H, W)
        return jnp.transpose(r, (0, 1, 3, 4, 2))

    def log_prob(self, samples):
        # samples: (B, C, H, W) float in [0, 1)
        B, C, HW, K = self._B, self._C, self._HW, self.num_buckets
        samples_b1n = samples.astype(jnp.float32).reshape(B, 1, C * HW)
        lp = _log_prob_pallas(self._params_bkn, samples_b1n, C, K, HW)
        return {'log_prob': lp}

    def sample(self, seed=0):
        B, C, H, W, HW, K = self._B, self._C, self._H, self._W, self._HW, self.num_buckets
        # In-kernel TPU PRNG (pltpu.prng_*) is unavailable under interpret /
        # CPU lowering; inverse-CDF needs only ONE uniform per element, so the
        # uniforms are generated with plain jax.random and DMA'd in.
        u = jax.random.uniform(jax.random.PRNGKey(seed), (B, 1, C * HW),
                               dtype=jnp.float32)
        samp = _sample_pallas(self._params_bkn, u, C, K, HW)
        return samp.reshape(B, C, H, W)


class IndependentQuantizedLayer:
    def __init__(self, num_buckets=8):
        self.num_buckets = num_buckets

    def __call__(self, distribution_params):
        # distribution_params: NCHW (B, C*num_buckets, H, W)
        return IndependentQuantizedDistribution(distribution_params,
                                                self.num_buckets)

    def params_size(self, channels):
        return self.num_buckets * channels


# --------------------------------------------------------------------------
# References (plain JAX) for correctness checks
# --------------------------------------------------------------------------
def _ref_log_prob(logits_bchwk, samples_bchw):
    K = logits_bchwk.shape[-1]
    q = jnp.clip(jnp.floor(samples_bchw * K), 0, K - 1).astype(jnp.int32)
    log_z = jax.scipy.special.logsumexp(logits_bchwk, axis=-1)
    chosen = jnp.take_along_axis(logits_bchwk, q[..., None], axis=-1)[..., 0]
    return jnp.sum(chosen - log_z, axis=(1, 2, 3))


def _ref_sample(logits_bchwk, u_bchw):
    K = logits_bchwk.shape[-1]
    m = jnp.max(logits_bchwk, axis=-1, keepdims=True)
    p = jnp.exp(logits_bchwk - m)
    z = jnp.sum(p, axis=-1, keepdims=True)
    cdf = jnp.cumsum(p, axis=-1)
    thresh = u_bchw[..., None] * z
    idx = jnp.sum((thresh >= cdf).astype(jnp.int32), axis=-1)
    idx = jnp.clip(idx, 0, K - 1).astype(jnp.float32)
    return idx / K + 0.5 / K


if __name__ == "__main__":
    key = jax.random.PRNGKey(0)
    k_params, k_samples = jax.random.split(key)

    B, C, H, W, K = 2, 4, 16, 16, 8
    # distribution params as produced by an upstream NCHW conv: (B, C*K, H, W)
    distribution_params = jax.random.normal(
        k_params, (B, C * K, H, W), dtype=jnp.float32)
    samples = jax.random.uniform(k_samples, (B, C, H, W), dtype=jnp.float32)

    layer = IndependentQuantizedLayer(num_buckets=K)
    dist = layer(distribution_params)

    # ---- log_prob kernel ----
    lp = dist.log_prob(samples)['log_prob']
    jax.block_until_ready(lp)
    logits_ref = dist.logits                       # (B, C, H, W, K) view
    lp_ref = _ref_log_prob(logits_ref, samples)
    assert lp.shape == (B,)
    assert jnp.allclose(lp, lp_ref, rtol=1e-4, atol=1e-2), (lp, lp_ref)

    # ---- sample kernel ----
    seed = 0
    samp = dist.sample(seed=seed)
    jax.block_until_ready(samp)
    assert samp.shape == (B, C, H, W)
    assert bool(jnp.all((samp > 0.0) & (samp < 1.0)))
    # cross-check against a pure-JAX inverse-CDF using the same uniforms
    u = jax.random.uniform(jax.random.PRNGKey(seed), (B, 1, C * H * W),
                           dtype=jnp.float32)
    samp_ref = _ref_sample(logits_ref, u.reshape(B, C, H, W))
    match = float(jnp.mean((samp == samp_ref).astype(jnp.float32)))
    assert match > 0.99, match

    print("KERNEL_OK")
</pallas_src>

<mosaic_0001>
module attributes {stable_mosaic.version = 11 : i64} {
  func.func @_log_prob_kernel(%arg0: i32, %arg1: i32, %arg2: i32, %arg3: memref<1x8x256xf32, #tpu.memory_space<vmem>>, %arg4: memref<1x1x256xf32, #tpu.memory_space<vmem>>, %arg5: memref<1x1x1xf32, #tpu.memory_space<vmem>>) attributes {dimension_semantics = [#tpu.dimension_semantics<parallel>, #tpu.dimension_semantics<arbitrary>, #tpu.dimension_semantics<arbitrary>], iteration_bounds = array<i64: 2, 4, 1>, scalar_prefetch = 0 : i64, scratch_operands = 0 : i64, tpu.core_type = #tpu.core_type<tc>, window_params = [{transform_indices = @transform_0, window_bounds = array<i64: 1, 8, 256>}, {transform_indices = @transform_1, window_bounds = array<i64: 1, 1, 256>}, {transform_indices = @transform_2, window_bounds = array<i64: 1, 1, 1>}]} {
    %c0_i32 = arith.constant 0 : i32
    %0 = arith.cmpi eq, %arg1, %c0_i32 : i32
    %c0_i32_0 = arith.constant 0 : i32
    %1 = arith.cmpi eq, %arg2, %c0_i32_0 : i32
    %2 = arith.andi %0, %1 : i1
    %3 = arith.extui %2 : i1 to i32
    %c0_i32_1 = arith.constant 0 : i32
    %4 = arith.cmpi ne, %3, %c0_i32_1 : i32
    scf.if %4 {
      %cst_20 = arith.constant 0.000000e+00 : f32
      %39 = vector.broadcast %cst_20 : f32 to vector<1x1x1xf32>
      %c0_21 = arith.constant 0 : index
      %c0_22 = arith.constant 0 : index
      %c0_23 = arith.constant 0 : index
      %40 = vector.load %arg5[%c0_21, %c0_22, %c0_23] : memref<1x1x1xf32, #tpu.memory_space<vmem>>, vector<1x1x1xf32>
      tpu.vector_store %arg5[%c0_21, %c0_22, %c0_23], %39 {strides = array<i32>} : memref<1x1x1xf32, #tpu.memory_space<vmem>>, vector<1x1x1xf32>,
    } else {
    }
    %c0 = arith.constant 0 : index
    %c0_2 = arith.constant 0 : index
    %c0_3 = arith.constant 0 : index
    %5 = vector.load %arg3[%c0, %c0_2, %c0_3] : memref<1x8x256xf32, #tpu.memory_space<vmem>>, vector<1x8x256xf32>
    %6 = vector.shape_cast %5 : vector<1x8x256xf32> to vector<8x256xf32>
    %c0_4 = arith.constant 0 : index
    %c0_5 = arith.constant 0 : index
    %c0_6 = arith.constant 0 : index
    %7 = vector.load %arg4[%c0_4, %c0_5, %c0_6] : memref<1x1x256xf32, #tpu.memory_space<vmem>>, vector<1x1x256xf32>
    %8 = vector.shape_cast %7 : vector<1x1x256xf32> to vector<1x256xf32>
    %cst = arith.constant 8.000000e+00 : f32
    %9 = vector.broadcast %cst : f32 to vector<1x256xf32>
    %10 = arith.mulf %8, %9 : vector<1x256xf32>
    %11 = math.floor %10 : vector<1x256xf32>
    %cst_7 = arith.constant 0.000000e+00 : f32
    %cst_8 = arith.constant 7.000000e+00 : f32
    %12 = vector.broadcast %cst_7 : f32 to vector<1x256xf32>
    %13 = arith.maximumf %12, %11 : vector<1x256xf32>
    %14 = vector.broadcast %cst_8 : f32 to vector<1x256xf32>
    %15 = arith.minimumf %14, %13 : vector<1x256xf32>
    %16 = arith.fptosi %15 : vector<1x256xf32> to vector<1x256xi32>
    %cst_9 = arith.constant dense<0xFF800000> : vector<256xf32>
    %17 = vector.multi_reduction <maximumf>, %6, %cst_9 [0] : vector<8x256xf32> to vector<256xf32>
    %18 = vector.shape_cast %17 : vector<256xf32> to vector<1x256xf32>
    %19 = vector.broadcast %18 : vector<1x256xf32> to vector<8x256xf32>
    %20 = arith.subf %6, %19 : vector<8x256xf32>
    %21 = math.exp %20 : vector<8x256xf32>
    %cst_10 = arith.constant dense<0.000000e+00> : vector<256xf32>
    %22 = vector.multi_reduction <add>, %21, %cst_10 [0] : vector<8x256xf32> to vector<256xf32>
    %23 = vector.shape_cast %22 : vector<256xf32> to vector<1x256xf32>
    %24 = math.log %23 : vector<1x256xf32>
    %25 = tpu.iota {dimensions = array<i32: 0>} : vector<8x256xi32>
    %26 = vector.broadcast %16 : vector<1x256xi32> to vector<8x256xi32>
    %27 = arith.cmpi eq, %25, %26 : vector<8x256xi32>
    %cst_11 = arith.constant 0xFF800000 : f32
    %28 = vector.broadcast %cst_11 : f32 to vector<8x256xf32>
    %29 = arith.select %27, %20, %28 : vector<8x256xi1>, vector<8x256xf32>
    %cst_12 = arith.constant dense<0xFF800000> : vector<256xf32>
    %30 = vector.multi_reduction <maximumf>, %29, %cst_12 [0] : vector<8x256xf32> to vector<256xf32>
    %31 = vector.shape_cast %30 : vector<256xf32> to vector<1x256xf32>
    %c0_13 = arith.constant 0 : index
    %c0_14 = arith.constant 0 : index
    %c0_15 = arith.constant 0 : index
    %32 = vector.load %arg5[%c0_13, %c0_14, %c0_15] : memref<1x1x1xf32, #tpu.memory_space<vmem>>, vector<1x1x1xf32>
    %33 = arith.subf %31, %24 : vector<1x256xf32>
    %cst_16 = arith.constant dense<0.000000e+00> : vector<1xf32>
    %34 = vector.multi_reduction <add>, %33, %cst_16 [1] : vector<1x256xf32> to vector<1xf32>
    %35 = vector.shape_cast %34 : vector<1xf32> to vector<1x1xf32>
    %36 = vector.shape_cast %35 : vector<1x1xf32> to vector<1x1x1xf32>
    %37 = arith.addf %32, %36 : vector<1x1x1xf32>
    %c0_17 = arith.constant 0 : index
    %c0_18 = arith.constant 0 : index
    %c0_19 = arith.constant 0 : index
    %38 = vector.load %arg5[%c0_17, %c0_18, %c0_19] : memref<1x1x1xf32, #tpu.memory_space<vmem>>, vector<1x1x1xf32>
    tpu.vector_store %arg5[%c0_17, %c0_18, %c0_19], %37 {strides = array<i32>} : memref<1x1x1xf32, #tpu.memory_space<vmem>>, vector<1x1x1xf32>,
    return
  }
  func.func @transform_0(%arg0: i32, %arg1: i32, %arg2: i32) -> (i32, i32, i32) {
    %c0_i32 = arith.constant 0 : i32
    return %arg0, %arg1, %arg2 : i32, i32, i32
  }
  func.func @transform_1(%arg0: i32, %arg1: i32, %arg2: i32) -> (i32, i32, i32) {
    %c1_i32 = arith.constant 1 : i32
    %0 = arith.muli %arg1, %c1_i32 : i32
    %1 = arith.addi %0, %arg2 : i32
    %c0_i32 = arith.constant 0 : i32
    %c0_i32_0 = arith.constant 0 : i32
    return %arg0, %c0_i32, %1 : i32, i32, i32
  }
  func.func @transform_2(%arg0: i32, %arg1: i32, %arg2: i32) -> (i32, i32, i32) {
    %c0_i32 = arith.constant 0 : i32
    %c0_i32_0 = arith.constant 0 : i32
    %c0_i32_1 = arith.constant 0 : i32
    return %arg0, %c0_i32, %c0_i32_0 : i32, i32, i32
  }
}

</mosaic_0001>

<llo_original>
// kernel: tpu_custom_call.1
$region0: #{tpu_custom_call.1}
  #allocation0 [shape = 'u32[]', space=smem, size = 0x4, offset = 0x4, fixed_abs, tag = 'smem constant byte address 0x4 - core index']
  #allocation1 [shape = 'u32[144,128]{1,0:T(1,128)}', space=vmem, size = 0x12000, scoped, tag = 'internal scratch']
  %s0 = inlined_call_operand.hbm [shape: f32[2,32,256], index: 0, kind: input, shape index: {}]
  %s1 = inlined_call_operand.hbm [shape: f32[2,1,1024], index: 1, kind: input, shape index: {}]
  %s2 = inlined_call_operand.vmem [shape: f32[2,1,1], index: 2, kind: output, shape index: {}]
  %s3 = sld [smem:[#allocation0]]
  $region53: #{tpu_custom_call.1} parent=0
    _
  %s5 = ssub.s32 1, %s3
  %s6 = scalar_select 0, %s5, %s3
  $region1: #{tpu_custom_call.1} parent=0
    #allocation2 [shape = 'u8[16384]{0}', space=vmem, size = 0x4000, scoped, tag = 'input window, operand 0']
    #allocation3 [shape = 's32[2]{0}', space=sflag, size = 0x8, scoped, tag = 'scoped memory for tpu_custom_call.1']
    #allocation4 [shape = 'u8[2048]{0}', space=vmem, size = 0x800, scoped, tag = 'input window, operand 1']
    #allocation5 [shape = 's32[2]{0}', space=sflag, size = 0x8, scoped, tag = 'scoped memory for tpu_custom_call.1']
    %7 = vsyncpa [#allocation3], 0
    %s8 = scalar_lea.sflag [#allocation3], 1
    %9 = vsyncpa %s8, 0
    %10 = vsyncpa [#allocation5], 0
    %s11 = scalar_lea.sflag [#allocation5], 1
    %12 = vsyncpa %s11, 0
    loop: start=0, step=1, limit=10
    $region2: #{tpu_custom_call.1} parent=1 // loop_pre_header
      _
    $region3: #{tpu_custom_call.1} parent=1 // loop_header
      %s14 = sphi 0, %s18
      %p15 = scmp.ge.s32.totalorder %s14, 10
      %s21 = sphi 0, %s40
      %s22 = sphi 0, %s36
      %s23 = sphi 0, %s32
      %s24 = sphi 0, %s21
      %s25 = sphi 0, %s22
      %s26 = sphi 0, %s23
      %s27 = sphi 0, %s24
      %s28 = sphi 0, %s25
      %s29 = sphi 0, %s26
      %s47 = sphi 0, %s49
      %s50 = sphi 0, %s47
      %s51 = sphi 0, %s50
      %s67 = sphi 0, %s51
      %s77 = sphi 0, %s79
      %s80 = sphi 0, %s77
      %s81 = sphi 0, %s80
      %s97 = sphi 0, %s81
      %s103 = sphi 0, %s105
      %s106 = sphi 0, %s103
      %s107 = sphi 0, %s106
      %s123 = sphi 0, %s107
    $region4: #{tpu_custom_call.1} parent=1 // loop_header_branch
      %17 = sbr.rel (%p15) target = $region8
    $region5: #{tpu_custom_call.1} parent=1 // loop_body
      %s19 = ssub.s32 %s14, 1
      %s20 = ssub.s32 %s14, 2
      %s30 = sadd.s32 1, %s23
      %p31 = scmp.ge.s32.totalorder %s30, 1
      %s32 = scalar_select %p31, 0, %s30
      %s33 = sadd.s32 1, %s22
      %s34 = scalar_select %p31, %s33, %s22
      %p35 = scmp.ge.s32.totalorder %s34, 4
      %s36 = scalar_select %p35, 0, %s34
      %s37 = sadd.s32 1, %s21
      %s38 = scalar_select %p35, %s37, %s21
      %p39 = scmp.ge.s32.totalorder %s38, 2
      %s40 = scalar_select %p39, 0, %s38
      %s41 = ssub.s32 %s21, %s40
      %s42 = ssub.s32 %s22, %s36
      %s43 = sor.u32 %s41, %s42
      %s44 = ssub.s32 %s23, %s32
      %s45 = sor.u32 %s43, %s44
      %p46 = scmp.eq.s32.totalorder %s45, 0
      %s48 = sadd.s32 %s47, 1
      %s49 = scalar_select %p46, %s47, %s48
      %p52 = pneg %p46
      %p53 = scmp.eq.s32.totalorder %s14, 7
      %p54 = por %p52, %p53
      %p55 = scmp.ne.s32.totalorder %s47, %s50
      %p56 = scmp.eq.s32.totalorder %s14, 0
      %p57 = por %p55, %p56
      %p58 = scmp.ne.s32.totalorder %s47, %s50
      %p59 = scmp.eq.s32.totalorder %s19, 7
      %p60 = por %p58, %p59
      %p61 = scmp.ne.s32.totalorder %s50, %s51
      %p62 = scmp.eq.s32.totalorder %s19, 0
      %p63 = por %p61, %p62
      %p64 = scmp.ne.s32.totalorder %s50, %s51
      %p65 = scmp.eq.s32.totalorder %s20, 7
      %p66 = por %p64, %p65
      %p68 = scmp.ne.s32.totalorder %s51, %s67
      %p69 = scmp.eq.s32.totalorder %s20, 0
      %p70 = por %p68, %p69
      %s71 = sadd.s32 %s22, %s23
      %s72 = sadd.s32 %s36, %s32
      %s73 = ssub.s32 %s21, %s40
      %s74 = ssub.s32 %s71, %s72
      %s75 = sor.u32 %s73, %s74
      %p76 = scmp.eq.s32.totalorder %s75, 0
      %s78 = sadd.s32 %s77, 1
      %s79 = scalar_select %p76, %s77, %s78
      %p82 = pneg %p76
      %p83 = scmp.eq.s32.totalorder %s14, 7
      %p84 = por %p82, %p83
      %p85 = scmp.ne.s32.totalorder %s77, %s80
      %p86 = scmp.eq.s32.totalorder %s14, 0
      %p87 = por %p85, %p86
      %p88 = scmp.ne.s32.totalorder %s77, %s80
      %p89 = scmp.eq.s32.totalorder %s19, 7
      %p90 = por %p88, %p89
      %p91 = scmp.ne.s32.totalorder %s80, %s81
      %p92 = scmp.eq.s32.totalorder %s19, 0
      %p93 = por %p91, %p92
      %p94 = scmp.ne.s32.totalorder %s80, %s81
      %p95 = scmp.eq.s32.totalorder %s20, 7
      %p96 = por %p94, %p95
      %p98 = scmp.ne.s32.totalorder %s81, %s97
      %p99 = scmp.eq.s32.totalorder %s20, 0
      %p100 = por %p98, %p99
      %s101 = ssub.s32 %s21, %s40
      %p102 = scmp.eq.s32.totalorder %s101, 0
      %s104 = sadd.s32 %s103, 1
      %s105 = scalar_select %p102, %s103, %s104
      %p108 = pneg %p102
      %p109 = scmp.eq.s32.totalorder %s14, 7
      %p110 = por %p108, %p109
      %p111 = scmp.ne.s32.totalorder %s103, %s106
      %p112 = scmp.eq.s32.totalorder %s14, 0
      %p113 = por %p111, %p112
      %p114 = scmp.ne.s32.totalorder %s103, %s106
      %p115 = scmp.eq.s32.totalorder %s19, 7
      %p116 = por %p114, %p115
      %p117 = scmp.ne.s32.totalorder %s106, %s107
      %p118 = scmp.eq.s32.totalorder %s19, 0
      %p119 = por %p117, %p118
      %p120 = scmp.ne.s32.totalorder %s106, %s107
      %p121 = scmp.eq.s32.totalorder %s20, 7
      %p122 = por %p120, %p121
      %p124 = scmp.ne.s32.totalorder %s107, %s123
      %p125 = scmp.eq.s32.totalorder %s20, 0
      %p126 = por %p124, %p125
      %p127 = scmp.le.s32.totalorder 1, %s14
      %p128 = scmp.lt.s32.totalorder %s14, 9
      %p129 = pnand %p127, %p128
      %p130 = pneg %p129
      // Predicated region
      $region9: #{tpu_custom_call.1} parent=5 // pred_check
        _
      $region10: #{tpu_custom_call.1} parent=5 // pred_check_branch
        %132 = sbr.rel (%p129) target = $region12
      $region11: #{tpu_custom_call.1} parent=5 // pred_region
        %s133 = ssub.s32 %s14, 1
      $region12: #{tpu_custom_call.1} parent=5 // pred_fallthru
        _
      %p134 = scmp.lt.s32.totalorder %s14, 8
      // Predicated region
      $region13: #{tpu_custom_call.1} parent=5 // pred_check
        %p135 = pneg %p134
      $region14: #{tpu_custom_call.1} parent=5 // pred_check_branch
        %137 = sbr.rel (%p135) target = $region16
      $region15: #{tpu_custom_call.1} parent=5 // pred_region
        // Predicated region
        $region17: #{tpu_custom_call.1} parent=15 // pred_check
          %p138 = pneg %p57
        $region18: #{tpu_custom_call.1} parent=15 // pred_check_branch
          %140 = sbr.rel (%p138) target = $region20
        $region19: #{tpu_custom_call.1} parent=15 // pred_region
          %s141 = sand.u32 %s47, 1
          %s142 = scalar_lea.sflag [#allocation3], %s141
          %s143 = sand.u32 %s47, 1
          %s144 = smul.addr %s143, 16
          %s145 = scalar_lea.vmem [#allocation2], %s144
          %s146 = smul.u32 2, %s23
          %s148 = ssub.s32 256, 256
          %149 = vsyncadd %s142, %s148
          %s150 = smul.addr %s22, 2
          %s151 = sadd.s32 %s146, %s150
          %s152 = smul.addr %s21, 8
          %s153 = sadd.s32 %s151, %s152
          %s154 = smul.addr %s153, 128
          %s155 = scalar_lea.hbm %s0, %s154
          %s157 = sshll.u32 %s145, 4
          %s158 = int_to_ptr.vmem [resolvable:$true] %s157
          %160 = dma.hbm_to_vmem [thread:$0]  %s155, 256, %s158, %s142
        $region20: #{tpu_custom_call.1} parent=15 // pred_fallthru
          _
        // Predicated region
        $region21: #{tpu_custom_call.1} parent=15 // pred_check
          %p161 = pneg %p87
        $region22: #{tpu_custom_call.1} parent=15 // pred_check_branch
          %163 = sbr.rel (%p161) target = $region24
        $region23: #{tpu_custom_call.1} parent=15 // pred_region
          %s164 = sand.u32 %s77, 1
          %s165 = scalar_lea.sflag [#allocation5], %s164
          %s166 = sand.u32 %s77, 1
          %s167 = smul.addr %s166, 2
          %s168 = scalar_lea.vmem [#allocation4], %s167
          %s169 = sadd.s32 %s22, %s23
          %s170 = smul.u32 2, %s169
          %s172 = ssub.s32 32, 32
          %173 = vsyncadd %s165, %s172
          %s174 = smul.addr %s21, 8
          %s175 = sadd.s32 %s170, %s174
          %s176 = smul.addr %s175, 16
          %s177 = scalar_lea.hbm %s1, %s176
          %s179 = sshll.u32 %s168, 4
          %s180 = int_to_ptr.vmem [resolvable:$true] %s179
          %182 = dma.hbm_to_vmem [thread:$0]  %s177, 32, %s180, %s165
        $region24: #{tpu_custom_call.1} parent=15 // pred_fallthru
          _
      $region16: #{tpu_custom_call.1} parent=5 // pred_fallthru
        _
      %p183 = scmp.le.s32.totalorder 1, %s14
      %p184 = scmp.lt.s32.totalorder %s14, 9
      %p185 = pnand %p183, %p184
      %p186 = pneg %p185
      // Predicated region
      $region25: #{tpu_custom_call.1} parent=5 // pred_check
        _
      $region26: #{tpu_custom_call.1} parent=5 // pred_check_branch
        %188 = sbr.rel (%p185) target = $region28
      $region27: #{tpu_custom_call.1} parent=5 // pred_region
        %s189 = ssub.s32 %s14, 1
        %s190 = sand.u32 %s50, 1
        %s191 = scalar_lea.sflag [#allocation3], %s190
        %s192 = sand.u32 %s50, 1
        %s193 = smul.addr %s192, 16
        %s194 = scalar_lea.vmem [#allocation2], %s193
        // Predicated region
        $region29: #{tpu_custom_call.1} parent=27 // pred_check
          %p195 = pneg %p63
        $region30: #{tpu_custom_call.1} parent=27 // pred_check_branch
          %197 = sbr.rel (%p195) target = $region32
        $region31: #{tpu_custom_call.1} parent=27 // pred_region
          %198 = dma.done %s191, 256
        $region32: #{tpu_custom_call.1} parent=27 // pred_fallthru
          _
        %s199 = sand.u32 %s80, 1
        %s200 = scalar_lea.sflag [#allocation5], %s199
        %s201 = sand.u32 %s80, 1
        %s202 = smul.addr %s201, 2
        %s203 = scalar_lea.vmem [#allocation4], %s202
        // Predicated region
        $region33: #{tpu_custom_call.1} parent=27 // pred_check
          %p204 = pneg %p93
        $region34: #{tpu_custom_call.1} parent=27 // pred_check_branch
          %206 = sbr.rel (%p204) target = $region36
        $region35: #{tpu_custom_call.1} parent=27 // pred_region
          %207 = dma.done %s200, 32
        $region36: #{tpu_custom_call.1} parent=27 // pred_fallthru
          _
        %s208 = sand.u32 %s50, 1
        %s209 = scalar_lea.sflag [#allocation3], %s208
        %s210 = sand.u32 %s50, 1
        %s211 = smul.addr %s210, 16
        %s212 = scalar_lea.vmem [#allocation2], %s211
        %p213 = pneg %p63
        %p214 = pneg %p60
        %s215 = sand.u32 %s80, 1
        %s216 = scalar_lea.sflag [#allocation5], %s215
        %s217 = sand.u32 %s80, 1
        %s218 = smul.addr %s217, 2
        %s219 = scalar_lea.vmem [#allocation4], %s218
        %p220 = pneg %p93
        %p221 = pneg %p90
        %p222 = pneg %p119
        %p223 = pneg %p116
        %p224 = scmp.lt.s32.totalorder %s24, 1
        %s225 = scalar_select %p224, %s24, 1
        %s226 = scalar_lea.vmem %s2, %s225
        %s227 = smul.u32 2, %s26
        %s228 = sadd.s32 %s25, %s26
        %s229 = smul.u32 2, %s228
        %p230 = scmp.lt.s32.totalorder %s24, 1
        %s231 = scalar_select %p230, %s24, 1
        %s232 = scalar_lea.vmem %s2, %s231
        %p233 = scmp.eq.s32.totalorder %s25, 0
        %p234 = scmp.eq.s32.totalorder %s26, 0
        %p235 = pnand %p233, %p234
        %p236 = pneg %p235
        // Predicated region
        $region37: #{tpu_custom_call.1} parent=27 // pred_check
          _
        $region38: #{tpu_custom_call.1} parent=27 // pred_check_branch
          %238 = sbr.rel (%p235) target = $region40
        $region39: #{tpu_custom_call.1} parent=27 // pred_region
          %vm239 = vcmask 0
          %240 = vst.msk [vmem:[%s232] sm:$0x1] %vm239, 0.0
        $region40: #{tpu_custom_call.1} parent=27 // pred_fallthru
          _
        %v241 = vld [vmem:[%s194] sm:$0xff]
        %v242 = vld [vmem:[%s194 + $0x8] sm:$0xff]
        %v243 = vld [vmem:[%s203] sm:$0x3]
        %v244 = vmul.f32 %v243, 8.0
        %v245 = vfloor.f32 %v244
        %v246 = vmax.f32 %v245, 0.0
        %v247 = vmin.f32 %v246, 7.0
        %v248 = vcvt.f32.s32.to.zero.pseudo %v247
        %v249 = vrot.slane %v241, 4
        %v250 = vmax.f32 %v241, %v249
        %v251 = vrot.slane %v250, 2
        %v252 = vmax.f32 %v250, %v251
        %v253 = vrot.slane %v252, 1
        %v254 = vmax.f32 %v252, %v253
        %v255 = vrot.slane %v242, 4
        %v256 = vmax.f32 %v242, %v255
        %v257 = vrot.slane %v256, 2
        %v258 = vmax.f32 %v256, %v257
        %v259 = vrot.slane %v258, 1
        %v260 = vmax.f32 %v258, %v259
        %v261 = vsub.f32 %v241, %v254
        %v262 = vsub.f32 %v242, %v260
        %v263 = vmul.f32 %v261, 1.442695
        %v264 = vpow.pop %v263
        %v265 = vmul.f32 %v262, 1.442695
        %v266 = vpow.pop %v265
        %v267 = vrot.slane %v264, 4
        %v268 = vadd.f32 %v264, %v267
        %v269 = vrot.slane %v268, 2
        %v270 = vadd.f32 %v268, %v269
        %v271 = vrot.slane %v270, 1
        %v272 = vadd.f32 %v270, %v271
        %v273 = vrot.slane %v266, 4
        %v274 = vadd.f32 %v266, %v273
        %v275 = vrot.slane %v274, 2
        %v276 = vadd.f32 %v274, %v275
        %v277 = vrot.slane %v276, 1
        %v278 = vadd.f32 %v276, %v277
        %v279 = vlog2.pop %v272
        %v280 = vmul.f32 %v279, 0.6931472
        %v281 = vlog2.pop %v278
        %v282 = vmul.f32 %v281, 0.6931472
        %v283 = vlaneseq
        %v284 = vshrl.u32 %v283, 7
        %v285 = vlaneseq
        %v286 = vshrl.u32 %v285, 7
        %v287 = vsub.s32 0, %v286
        %v288 = vrot.slane %v248, %v287
        %v289 = vlaneseq
        %v290 = vshrl.u32 %v289, 7
        %v291 = vsub.s32 1, %v290
        %v292 = vrot.slane %v248, %v291
        %vm293 = vcmp.eq.s32.totalorder %v284, %v288
        %vm294 = vcmp.eq.s32.totalorder %v284, %v292
        %v295 = vsel %vm293, %v261, -inf
        %v296 = vsel %vm294, %v262, -inf
        %v297 = vrot.slane %v295, 4
        %v298 = vmax.f32 %v295, %v297
        %v299 = vrot.slane %v298, 2
        %v300 = vmax.f32 %v298, %v299
        %v301 = vrot.slane %v300, 1
        %v302 = vmax.f32 %v300, %v301
        %v303 = vrot.slane %v296, 4
        %v304 = vmax.f32 %v296, %v303
        %v305 = vrot.slane %v304, 2
        %v306 = vmax.f32 %v304, %v305
        %v307 = vrot.slane %v306, 1
        %v308 = vmax.f32 %v306, %v307
        %v309 = vld [vmem:[%s232] sm:$0x1]
        %v310 = vsub.f32 %v302, %v280
        %v311 = vsub.f32 %v308, %v282
        %v312 = vadd.f32 %v310, %v311
        %313 = vadd.xlane.f32.xlu0 %v312
        %v314 = vpop.xlane.xlu0 %313
        %v315 = vadd.f32 %v309, %v314
        %vm316 = vcmask 0
        %317 = vst.msk [vmem:[%s232] sm:$0x1] %vm316, %v315
        %p318 = scmp.lt.s32.totalorder %s24, 1
        %s319 = scalar_select %p318, %s24, 1
        %s320 = scalar_lea.vmem %s2, %s319
        // Predicated region
        $region41: #{tpu_custom_call.1} parent=27 // pred_check
          %p321 = pneg %p116
        $region42: #{tpu_custom_call.1} parent=27 // pred_check_branch
          %323 = sbr.rel (%p321) target = $region44
        $region43: #{tpu_custom_call.1} parent=27 // pred_region
          _
        $region44: #{tpu_custom_call.1} parent=27 // pred_fallthru
          _
      $region28: #{tpu_custom_call.1} parent=5 // pred_fallthru
        _
      %p324 = scmp.le.s32.totalorder 2, %s14
      // Predicated region
      $region45: #{tpu_custom_call.1} parent=5 // pred_check
        %p325 = pneg %p324
      $region46: #{tpu_custom_call.1} parent=5 // pred_check_branch
        %327 = sbr.rel (%p325) target = $region48
      $region47: #{tpu_custom_call.1} parent=5 // pred_region
        %s328 = ssub.s32 %s14, 2
        // Predicated region
        $region49: #{tpu_custom_call.1} parent=47 // pred_check
          %p329 = pneg %p122
        $region50: #{tpu_custom_call.1} parent=47 // pred_check_branch
          %331 = sbr.rel (%p329) target = $region52
        $region51: #{tpu_custom_call.1} parent=47 // pred_region
          %p332 = scmp.lt.s32.totalorder %s27, 1
          %s333 = scalar_select %p332, %s27, 1
          %s334 = scalar_lea.vmem %s2, %s333
        $region52: #{tpu_custom_call.1} parent=47 // pred_fallthru
          _
      $region48: #{tpu_custom_call.1} parent=5 // pred_fallthru
        _
    $region6: #{tpu_custom_call.1} parent=1 // loop_footer
      %s18 = sadd.s32 1, %s14
    $region7: #{tpu_custom_call.1} parent=1 // loop_footer_branch
      %13 = sbr.rel target = $region3
    $region8: #{tpu_custom_call.1} parent=1 // loop_exit
      _
    %335 = vsyncpa [#allocation3], 1
    %s336 = scalar_lea.sflag [#allocation3], 1
    %337 = vsyncpa %s336, 1
    %338 = vsyncpa [#allocation5], 1
    %s339 = scalar_lea.sflag [#allocation5], 1
    %340 = vsyncpa %s339, 1

</llo_original>
